<compile_context>
chip_gen: v5e
topology: v5e:2x2
jax: 0.10.0
libtpu: 0.0.40
codegen_flags: <defaults>
</compile_context>

<pallas_src>
import numpy as np
import jax
import jax.numpy as jnp
from jax import lax
from jax.experimental import pallas as pl
from jax.experimental.pallas import tpu as pltpu

# ---- cfg stand-ins (small, deterministic) ----
CLASSES_NUM = 6
FEATURE_MAPS_NUM = 32     # F
KERNAL_LENGTH = 3         # KL
POOLING_OUT = 4           # P
WORD_EMBEDDING_DIM = 32   # D


# ---------------- fused Pallas kernel ----------------

def fused_forward_kernel(rois_ref, ridx_ref,                 # scalar-prefetch (SMEM)
                         xpad_ref, wconv_ref, bconv_ref,     # VMEM inputs
                         wfc_ref, bfc_ref,
                         o_ref,                              # VMEM output
                         feat_ref):                          # VMEM scratch (N, H_out, F)
    N, S_pad, D = xpad_ref.shape
    KL = wconv_ref.shape[0]
    F = wconv_ref.shape[2]
    H_out = S_pad - KL + 1
    n_rows = o_ref.shape[0]

    # ---- Conv2d((KL, D), seq padding already applied) + ReLU ----
    # One sentence per (static, tiny) iteration; KL shifted matmuls, f32 acc.
    for n in range(N):
        acc = jnp.zeros((H_out, F), jnp.float32)
        for k in range(KL):
            acc = acc + jnp.dot(xpad_ref[n, k:k + H_out, :], wconv_ref[k],
                                preferred_element_type=jnp.float32)
        feat_ref[n] = jnp.maximum(acc + bconv_ref[...], 0.0)

    # ---- ROI max-pool over the seq axis ----
    # Features are >= 0 post-ReLU, so masked fill value 0.0 is exact (no -inf).
    h_idx = lax.broadcasted_iota(jnp.int32, (H_out, F), 0)
    row_ids = lax.broadcasted_iota(jnp.int32, (n_rows, F), 0)
    pooled = jnp.zeros((n_rows, F), jnp.float32)
    for i in range(n_rows):                       # static loop, n_rows is small
        left = rois_ref[i, 0]
        right = rois_ref[i, 1]                    # inclusive right boundary
        feats = feat_ref[ridx_ref[i]]             # (H_out, F), dynamic sentence pick
        mask = (h_idx >= left) & (h_idx <= right)
        row_max = jnp.max(jnp.where(mask, feats, 0.0), axis=0, keepdims=True)
        pooled = jnp.where(row_ids == i, row_max, pooled)

    # ---- folded (AdaptiveMaxPool replicate ⊗ cls_fc1 ⊗ cls_score) affine ----
    o_ref[...] = jnp.dot(pooled, wfc_ref[...],
                         preferred_element_type=jnp.float32) + bfc_ref[...]


# ---------------- wrapper ----------------

def rcnn_no_regressor_forward(sentence, rois, ridx, params):
    sentence = sentence.astype(jnp.float32)
    N, _, S, D = sentence.shape
    KL, F, P = KERNAL_LENGTH, FEATURE_MAPS_NUM, POOLING_OUT
    C = CLASSES_NUM + 1
    S_pad = S + 2
    H_out = S_pad - KL + 1                        # Conv2d padding=(1, 0), stride 1

    # seq-axis zero padding for the conv; no im2col materialization.
    x_pad = jnp.pad(sentence[:, 0], ((0, 0), (1, 1), (0, 0)))          # (N, S+2, D)

    # conv weights as KL separate (D, F) matmul operands.
    w_conv = jnp.transpose(params["conv_w"][:, 0], (1, 2, 0))          # (KL, D, F)
    b_conv = params["conv_b"].reshape(1, F)

    # Fold repeat(P) + cls_fc1 + cls_score into one (F, C) affine map:
    #   scores = repeat(pooled, P) @ W1^T @ W2^T + (b1 @ W2^T + b2)
    #          = pooled @ W_fold + b_fold
    M = params["fc1_w"].T @ params["score_w"].T                        # (F*P, C)
    w_fold = M.reshape(F, P, C).sum(axis=1)                            # (F, C)
    b_fold = params["fc1_b"] @ params["score_w"].T + params["score_b"] # (C,)

    # Lane-dense output: pad class dim to a multiple of 128; ROI rows to 8.
    C_pad = ((C + 127) // 128) * 128
    w_fc = jnp.pad(w_fold, ((0, 0), (0, C_pad - C)))                   # (F, C_pad)
    b_fc = jnp.pad(b_fold, (0, C_pad - C)).reshape(1, C_pad)

    n_rois = rois.shape[0]
    n_rows = ((n_rois + 7) // 8) * 8
    rois_p = jnp.pad(rois.astype(jnp.int32), ((0, n_rows - n_rois), (0, 0)))
    ridx_p = jnp.pad(ridx.astype(jnp.int32), (0, n_rows - n_rois))

    out = pl.pallas_call(
        fused_forward_kernel,
        out_shape=jax.ShapeDtypeStruct((n_rows, C_pad), jnp.float32),
        grid_spec=pltpu.PrefetchScalarGridSpec(
            num_scalar_prefetch=2,
            grid=(1,),          # whole problem fits easily in VMEM at these sizes
            in_specs=[
                pl.BlockSpec((N, S_pad, D), lambda i, _r, _x: (0, 0, 0)),   # x_pad
                pl.BlockSpec((KL, D, F),    lambda i, _r, _x: (0, 0, 0)),   # conv W
                pl.BlockSpec((1, F),        lambda i, _r, _x: (0, 0)),      # conv b
                pl.BlockSpec((F, C_pad),    lambda i, _r, _x: (0, 0)),      # folded FC W
                pl.BlockSpec((1, C_pad),    lambda i, _r, _x: (0, 0)),      # folded FC b
            ],
            out_specs=pl.BlockSpec((n_rows, C_pad), lambda i, _r, _x: (0, 0)),
            scratch_shapes=[pltpu.VMEM((N, H_out, F), jnp.float32)],
        ),
        compiler_params=pltpu.CompilerParams(
            dimension_semantics=("arbitrary",)),
    )(rois_p, ridx_p, x_pad, w_conv, b_conv, w_fc, b_fc)

    return out[:n_rois, :C]


# ---------------- pure-JAX reference (for correctness check) ----------------

def reference_forward(sentence, rois_np, ridx_np, params):
    sentence = sentence.astype(jnp.float32)
    N, _, S, D = sentence.shape
    KL, F, P = KERNAL_LENGTH, FEATURE_MAPS_NUM, POOLING_OUT
    H_out = S + 2 - KL + 1

    x = sentence[:, 0]
    x_pad = jnp.pad(x, ((0, 0), (1, 1), (0, 0)))
    cols = jnp.concatenate([x_pad[:, k:k + H_out, :] for k in range(KL)], axis=-1)
    cols = cols.reshape(N * H_out, KL * D)
    conv = jnp.maximum(cols @ params["conv_w"].reshape(F, KL * D).T
                       + params["conv_b"][None, :], 0.0).reshape(N, H_out, F)

    pooled_rows = []
    for i in range(rois_np.shape[0]):
        l, r = int(rois_np[i, 0]), int(rois_np[i, 1]) + 1
        pooled_rows.append(jnp.max(conv[int(ridx_np[i]), l:r, :], axis=0))
    pooled = jnp.stack(pooled_rows, axis=0)               # (n_rois, F)
    flat = jnp.repeat(pooled, P, axis=1)

    h = flat @ params["fc1_w"].T + params["fc1_b"][None, :]
    return h @ params["score_w"].T + params["score_b"][None, :]


# ---------------- main ----------------

if __name__ == "__main__":
    F, KL, D, P = FEATURE_MAPS_NUM, KERNAL_LENGTH, WORD_EMBEDDING_DIM, POOLING_OUT
    FP = F * P

    key = jax.random.PRNGKey(0)
    ks = jax.random.split(key, 8)

    params = {
        "conv_w":  jax.random.normal(ks[0], (F, 1, KL, D), jnp.float32) * 0.1,
        "conv_b":  jax.random.normal(ks[1], (F,), jnp.float32) * 0.1,
        "fc1_w":   jax.random.normal(ks[2], (FP, FP), jnp.float32) * 0.05,
        "fc1_b":   jax.random.normal(ks[3], (FP,), jnp.float32) * 0.05,
        "score_w": jax.random.normal(ks[4], (CLASSES_NUM + 1, FP), jnp.float32) * 0.05,
        "score_b": jax.random.normal(ks[5], (CLASSES_NUM + 1,), jnp.float32) * 0.05,
    }

    # small example inputs
    N, S = 2, 16
    sentence = jax.random.normal(ks[6], (N, 1, S, D), jnp.float32)   # NCHW
    H_out = S + 2 - KL + 1
    rois_np = np.array([[0, 3], [2, 7], [5, 5], [1, 15],
                        [8, 12], [0, 0], [4, 10], [6, 14]], dtype=np.int32)
    ridx_np = np.array([0, 1, 0, 1, 0, 1, 0, 1], dtype=np.int32)
    assert int(rois_np.max()) < H_out

    rois = jnp.asarray(rois_np)
    ridx = jnp.asarray(ridx_np)

    out = rcnn_no_regressor_forward(sentence, rois, ridx, params)
    out = jax.block_until_ready(out)

    ref = reference_forward(sentence, rois_np, ridx_np, params)
    np.testing.assert_allclose(np.asarray(out), np.asarray(ref),
                               rtol=5e-3, atol=5e-3)
    assert out.shape == (rois_np.shape[0], CLASSES_NUM + 1)
    assert out.dtype == jnp.float32

    print("KERNEL_OK")
</pallas_src>

<mosaic_0001>
module attributes {stable_mosaic.version = 11 : i64} {
  func.func @fused_forward_kernel(%arg0: i32, %arg1: memref<8x2xi32, #tpu.memory_space<smem>>, %arg2: memref<8xi32, #tpu.memory_space<smem>>, %arg3: memref<2x18x32xf32, #tpu.memory_space<vmem>>, %arg4: memref<3x32x32xf32, #tpu.memory_space<vmem>>, %arg5: memref<1x32xf32, #tpu.memory_space<vmem>>, %arg6: memref<32x128xf32, #tpu.memory_space<vmem>>, %arg7: memref<1x128xf32, #tpu.memory_space<vmem>>, %arg8: memref<8x128xf32, #tpu.memory_space<vmem>>, %arg9: memref<2x16x32xf32, #tpu.memory_space<vmem>>) attributes {dimension_semantics = [#tpu.dimension_semantics<arbitrary>], iteration_bounds = array<i64: 1>, scalar_prefetch = 2 : i64, scratch_operands = 1 : i64, tpu.core_type = #tpu.core_type<tc>, window_params = [{pipeline_mode = #tpu.pipeline_mode<synchronous>, transform_indices = @transform_0, window_bounds = array<i64: 2, 18, 32>}, {pipeline_mode = #tpu.pipeline_mode<synchronous>, transform_indices = @transform_1, window_bounds = array<i64: 3, 32, 32>}, {pipeline_mode = #tpu.pipeline_mode<synchronous>, transform_indices = @transform_2, window_bounds = array<i64: 1, 32>}, {pipeline_mode = #tpu.pipeline_mode<synchronous>, transform_indices = @transform_3, window_bounds = array<i64: 32, 128>}, {pipeline_mode = #tpu.pipeline_mode<synchronous>, transform_indices = @transform_4, window_bounds = array<i64: 1, 128>}, {pipeline_mode = #tpu.pipeline_mode<synchronous>, transform_indices = @transform_5, window_bounds = array<i64: 8, 128>}]} {
    %cst = arith.constant 0.000000e+00 : f32
    %0 = vector.broadcast %cst : f32 to vector<16x32xf32>
    %c0 = arith.constant 0 : index
    %c0_0 = arith.constant 0 : index
    %c0_1 = arith.constant 0 : index
    %1 = vector.load %arg3[%c0, %c0_0, %c0_1] : memref<2x18x32xf32, #tpu.memory_space<vmem>>, vector<1x16x32xf32>
    %2 = vector.shape_cast %1 : vector<1x16x32xf32> to vector<16x32xf32>
    %c0_2 = arith.constant 0 : index
    %c0_3 = arith.constant 0 : index
    %c0_4 = arith.constant 0 : index
    %3 = vector.load %arg4[%c0_2, %c0_3, %c0_4] : memref<3x32x32xf32, #tpu.memory_space<vmem>>, vector<1x32x32xf32>
    %4 = vector.shape_cast %3 : vector<1x32x32xf32> to vector<32x32xf32>
    %cst_5 = arith.constant dense<0.000000e+00> : vector<16x32xf32>
    %5 = tpu.matmul %2, %4, %cst_5 {dimension_numbers = #tpu.dot_dimension_numbers<[1], [0], [0], [1], [0, 0, 1, 1], [], []>} : vector<16x32xf32>, vector<32x32xf32>, vector<16x32xf32> -> vector<16x32xf32>
    %6 = arith.addf %0, %5 : vector<16x32xf32>
    %c0_6 = arith.constant 0 : index
    %c1 = arith.constant 1 : index
    %c0_7 = arith.constant 0 : index
    %7 = vector.load %arg3[%c0_6, %c1, %c0_7] : memref<2x18x32xf32, #tpu.memory_space<vmem>>, vector<1x16x32xf32>
    %8 = vector.shape_cast %7 : vector<1x16x32xf32> to vector<16x32xf32>
    %c1_8 = arith.constant 1 : index
    %c0_9 = arith.constant 0 : index
    %c0_10 = arith.constant 0 : index
    %9 = vector.load %arg4[%c1_8, %c0_9, %c0_10] : memref<3x32x32xf32, #tpu.memory_space<vmem>>, vector<1x32x32xf32>
    %10 = vector.shape_cast %9 : vector<1x32x32xf32> to vector<32x32xf32>
    %cst_11 = arith.constant dense<0.000000e+00> : vector<16x32xf32>
    %11 = tpu.matmul %8, %10, %cst_11 {dimension_numbers = #tpu.dot_dimension_numbers<[1], [0], [0], [1], [0, 0, 1, 1], [], []>} : vector<16x32xf32>, vector<32x32xf32>, vector<16x32xf32> -> vector<16x32xf32>
    %12 = arith.addf %6, %11 : vector<16x32xf32>
    %c0_12 = arith.constant 0 : index
    %c2 = arith.constant 2 : index
    %c0_13 = arith.constant 0 : index
    %13 = vector.load %arg3[%c0_12, %c2, %c0_13] : memref<2x18x32xf32, #tpu.memory_space<vmem>>, vector<1x16x32xf32>
    %14 = vector.shape_cast %13 : vector<1x16x32xf32> to vector<16x32xf32>
    %c2_14 = arith.constant 2 : index
    %c0_15 = arith.constant 0 : index
    %c0_16 = arith.constant 0 : index
    %15 = vector.load %arg4[%c2_14, %c0_15, %c0_16] : memref<3x32x32xf32, #tpu.memory_space<vmem>>, vector<1x32x32xf32>
    %16 = vector.shape_cast %15 : vector<1x32x32xf32> to vector<32x32xf32>
    %cst_17 = arith.constant dense<0.000000e+00> : vector<16x32xf32>
    %17 = tpu.matmul %14, %16, %cst_17 {dimension_numbers = #tpu.dot_dimension_numbers<[1], [0], [0], [1], [0, 0, 1, 1], [], []>} : vector<16x32xf32>, vector<32x32xf32>, vector<16x32xf32> -> vector<16x32xf32>
    %18 = arith.addf %12, %17 : vector<16x32xf32>
    %c0_18 = arith.constant 0 : index
    %c0_19 = arith.constant 0 : index
    %19 = vector.load %arg5[%c0_18, %c0_19] : memref<1x32xf32, #tpu.memory_space<vmem>>, vector<1x32xf32>
    %20 = vector.broadcast %19 : vector<1x32xf32> to vector<16x32xf32>
    %21 = arith.addf %18, %20 : vector<16x32xf32>
    %cst_20 = arith.constant 0.000000e+00 : f32
    %22 = vector.broadcast %cst_20 : f32 to vector<16x32xf32>
    %23 = arith.maximumf %21, %22 : vector<16x32xf32>
    %c0_21 = arith.constant 0 : index
    %c0_22 = arith.constant 0 : index
    %c0_23 = arith.constant 0 : index
    %24 = vector.load %arg9[%c0_21, %c0_22, %c0_23] : memref<2x16x32xf32, #tpu.memory_space<vmem>>, vector<1x16x32xf32>
    %25 = vector.shape_cast %24 : vector<1x16x32xf32> to vector<16x32xf32>
    %26 = vector.shape_cast %23 : vector<16x32xf32> to vector<1x16x32xf32>
    tpu.vector_store %arg9[%c0_21, %c0_22, %c0_23], %26 {strides = array<i32>} : memref<2x16x32xf32, #tpu.memory_space<vmem>>, vector<1x16x32xf32>,
    %cst_24 = arith.constant 0.000000e+00 : f32
    %27 = vector.broadcast %cst_24 : f32 to vector<16x32xf32>
    %c1_25 = arith.constant 1 : index
    %c0_26 = arith.constant 0 : index
    %c0_27 = arith.constant 0 : index
    %28 = vector.load %arg3[%c1_25, %c0_26, %c0_27] : memref<2x18x32xf32, #tpu.memory_space<vmem>>, vector<1x16x32xf32>
    %29 = vector.shape_cast %28 : vector<1x16x32xf32> to vector<16x32xf32>
    %c0_28 = arith.constant 0 : index
    %c0_29 = arith.constant 0 : index
    %c0_30 = arith.constant 0 : index
    %30 = vector.load %arg4[%c0_28, %c0_29, %c0_30] : memref<3x32x32xf32, #tpu.memory_space<vmem>>, vector<1x32x32xf32>
    %31 = vector.shape_cast %30 : vector<1x32x32xf32> to vector<32x32xf32>
    %cst_31 = arith.constant dense<0.000000e+00> : vector<16x32xf32>
    %32 = tpu.matmul %29, %31, %cst_31 {dimension_numbers = #tpu.dot_dimension_numbers<[1], [0], [0], [1], [0, 0, 1, 1], [], []>} : vector<16x32xf32>, vector<32x32xf32>, vector<16x32xf32> -> vector<16x32xf32>
    %33 = arith.addf %27, %32 : vector<16x32xf32>
    %c1_32 = arith.constant 1 : index
    %c1_33 = arith.constant 1 : index
    %c0_34 = arith.constant 0 : index
    %34 = vector.load %arg3[%c1_32, %c1_33, %c0_34] : memref<2x18x32xf32, #tpu.memory_space<vmem>>, vector<1x16x32xf32>
    %35 = vector.shape_cast %34 : vector<1x16x32xf32> to vector<16x32xf32>
    %c1_35 = arith.constant 1 : index
    %c0_36 = arith.constant 0 : index
    %c0_37 = arith.constant 0 : index
    %36 = vector.load %arg4[%c1_35, %c0_36, %c0_37] : memref<3x32x32xf32, #tpu.memory_space<vmem>>, vector<1x32x32xf32>
    %37 = vector.shape_cast %36 : vector<1x32x32xf32> to vector<32x32xf32>
    %cst_38 = arith.constant dense<0.000000e+00> : vector<16x32xf32>
    %38 = tpu.matmul %35, %37, %cst_38 {dimension_numbers = #tpu.dot_dimension_numbers<[1], [0], [0], [1], [0, 0, 1, 1], [], []>} : vector<16x32xf32>, vector<32x32xf32>, vector<16x32xf32> -> vector<16x32xf32>
    %39 = arith.addf %33, %38 : vector<16x32xf32>
    %c1_39 = arith.constant 1 : index
    %c2_40 = arith.constant 2 : index
    %c0_41 = arith.constant 0 : index
    %40 = vector.load %arg3[%c1_39, %c2_40, %c0_41] : memref<2x18x32xf32, #tpu.memory_space<vmem>>, vector<1x16x32xf32>
    %41 = vector.shape_cast %40 : vector<1x16x32xf32> to vector<16x32xf32>
    %c2_42 = arith.constant 2 : index
    %c0_43 = arith.constant 0 : index
    %c0_44 = arith.constant 0 : index
    %42 = vector.load %arg4[%c2_42, %c0_43, %c0_44] : memref<3x32x32xf32, #tpu.memory_space<vmem>>, vector<1x32x32xf32>
    %43 = vector.shape_cast %42 : vector<1x32x32xf32> to vector<32x32xf32>
    %cst_45 = arith.constant dense<0.000000e+00> : vector<16x32xf32>
    %44 = tpu.matmul %41, %43, %cst_45 {dimension_numbers = #tpu.dot_dimension_numbers<[1], [0], [0], [1], [0, 0, 1, 1], [], []>} : vector<16x32xf32>, vector<32x32xf32>, vector<16x32xf32> -> vector<16x32xf32>
    %45 = arith.addf %39, %44 : vector<16x32xf32>
    %c0_46 = arith.constant 0 : index
    %c0_47 = arith.constant 0 : index
    %46 = vector.load %arg5[%c0_46, %c0_47] : memref<1x32xf32, #tpu.memory_space<vmem>>, vector<1x32xf32>
    %47 = vector.broadcast %46 : vector<1x32xf32> to vector<16x32xf32>
    %48 = arith.addf %45, %47 : vector<16x32xf32>
    %cst_48 = arith.constant 0.000000e+00 : f32
    %49 = vector.broadcast %cst_48 : f32 to vector<16x32xf32>
    %50 = arith.maximumf %48, %49 : vector<16x32xf32>
    %c1_49 = arith.constant 1 : index
    %c0_50 = arith.constant 0 : index
    %c0_51 = arith.constant 0 : index
    %51 = vector.load %arg9[%c1_49, %c0_50, %c0_51] : memref<2x16x32xf32, #tpu.memory_space<vmem>>, vector<1x16x32xf32>
    %52 = vector.shape_cast %51 : vector<1x16x32xf32> to vector<16x32xf32>
    %53 = vector.shape_cast %50 : vector<16x32xf32> to vector<1x16x32xf32>
    tpu.vector_store %arg9[%c1_49, %c0_50, %c0_51], %53 {strides = array<i32>} : memref<2x16x32xf32, #tpu.memory_space<vmem>>, vector<1x16x32xf32>,
    %54 = tpu.iota {dimensions = array<i32: 0>} : vector<16x32xi32>
    %55 = tpu.iota {dimensions = array<i32: 0>} : vector<8x32xi32>
    %cst_52 = arith.constant 0.000000e+00 : f32
    %56 = vector.broadcast %cst_52 : f32 to vector<8x32xf32>
    %c0_53 = arith.constant 0 : index
    %c0_54 = arith.constant 0 : index
    %57 = memref.load %arg1[%c0_53, %c0_54] : memref<8x2xi32, #tpu.memory_space<smem>>
    %c0_55 = arith.constant 0 : index
    %c1_56 = arith.constant 1 : index
    %58 = memref.load %arg1[%c0_55, %c1_56] : memref<8x2xi32, #tpu.memory_space<smem>>
    %c0_57 = arith.constant 0 : index
    %59 = memref.load %arg2[%c0_57] : memref<8xi32, #tpu.memory_space<smem>>
    %60 = arith.index_cast %59 : i32 to index
    %c0_58 = arith.constant 0 : index
    %c0_59 = arith.constant 0 : index
    %61 = vector.load %arg9[%60, %c0_58, %c0_59] : memref<2x16x32xf32, #tpu.memory_space<vmem>>, vector<1x16x32xf32>
    %62 = vector.shape_cast %61 : vector<1x16x32xf32> to vector<16x32xf32>
    %63 = vector.broadcast %57 : i32 to vector<16x32xi32>
    %64 = arith.cmpi sge, %54, %63 : vector<16x32xi32>
    %65 = vector.broadcast %58 : i32 to vector<16x32xi32>
    %66 = arith.cmpi sle, %54, %65 : vector<16x32xi32>
    %67 = arith.andi %64, %66 : vector<16x32xi1>
    %cst_60 = arith.constant 0.000000e+00 : f32
    %68 = vector.broadcast %cst_60 : f32 to vector<16x32xf32>
    %69 = arith.select %67, %62, %68 : vector<16x32xi1>, vector<16x32xf32>
    %cst_61 = arith.constant dense<0xFF800000> : vector<32xf32>
    %70 = vector.multi_reduction <maximumf>, %69, %cst_61 [0] : vector<16x32xf32> to vector<32xf32>
    %71 = vector.shape_cast %70 : vector<32xf32> to vector<1x32xf32>
    %c0_i32 = arith.constant 0 : i32
    %72 = vector.broadcast %c0_i32 : i32 to vector<8x32xi32>
    %73 = arith.cmpi eq, %55, %72 : vector<8x32xi32>
    %74 = vector.shape_cast %71 : vector<1x32xf32> to vector<1x32xf32>
    %75 = vector.broadcast %74 : vector<1x32xf32> to vector<8x32xf32>
    %76 = arith.select %73, %75, %56 : vector<8x32xi1>, vector<8x32xf32>
    %c1_62 = arith.constant 1 : index
    %c0_63 = arith.constant 0 : index
    %77 = memref.load %arg1[%c1_62, %c0_63] : memref<8x2xi32, #tpu.memory_space<smem>>
    %c1_64 = arith.constant 1 : index
    %c1_65 = arith.constant 1 : index
    %78 = memref.load %arg1[%c1_64, %c1_65] : memref<8x2xi32, #tpu.memory_space<smem>>
    %c1_66 = arith.constant 1 : index
    %79 = memref.load %arg2[%c1_66] : memref<8xi32, #tpu.memory_space<smem>>
    %80 = arith.index_cast %79 : i32 to index
    %c0_67 = arith.constant 0 : index
    %c0_68 = arith.constant 0 : index
    %81 = vector.load %arg9[%80, %c0_67, %c0_68] : memref<2x16x32xf32, #tpu.memory_space<vmem>>, vector<1x16x32xf32>
    %82 = vector.shape_cast %81 : vector<1x16x32xf32> to vector<16x32xf32>
    %83 = vector.broadcast %77 : i32 to vector<16x32xi32>
    %84 = arith.cmpi sge, %54, %83 : vector<16x32xi32>
    %85 = vector.broadcast %78 : i32 to vector<16x32xi32>
    %86 = arith.cmpi sle, %54, %85 : vector<16x32xi32>
    %87 = arith.andi %84, %86 : vector<16x32xi1>
    %cst_69 = arith.constant 0.000000e+00 : f32
    %88 = vector.broadcast %cst_69 : f32 to vector<16x32xf32>
    %89 = arith.select %87, %82, %88 : vector<16x32xi1>, vector<16x32xf32>
    %cst_70 = arith.constant dense<0xFF800000> : vector<32xf32>
    %90 = vector.multi_reduction <maximumf>, %89, %cst_70 [0] : vector<16x32xf32> to vector<32xf32>
    %91 = vector.shape_cast %90 : vector<32xf32> to vector<1x32xf32>
    %c1_i32 = arith.constant 1 : i32
    %92 = vector.broadcast %c1_i32 : i32 to vector<8x32xi32>
    %93 = arith.cmpi eq, %55, %92 : vector<8x32xi32>
    %94 = vector.shape_cast %91 : vector<1x32xf32> to vector<1x32xf32>
    %95 = vector.broadcast %94 : vector<1x32xf32> to vector<8x32xf32>
    %96 = arith.select %93, %95, %76 : vector<8x32xi1>, vector<8x32xf32>
    %c2_71 = arith.constant 2 : index
    %c0_72 = arith.constant 0 : index
    %97 = memref.load %arg1[%c2_71, %c0_72] : memref<8x2xi32, #tpu.memory_space<smem>>
    %c2_73 = arith.constant 2 : index
    %c1_74 = arith.constant 1 : index
    %98 = memref.load %arg1[%c2_73, %c1_74] : memref<8x2xi32, #tpu.memory_space<smem>>
    %c2_75 = arith.constant 2 : index
    %99 = memref.load %arg2[%c2_75] : memref<8xi32, #tpu.memory_space<smem>>
    %100 = arith.index_cast %99 : i32 to index
    %c0_76 = arith.constant 0 : index
    %c0_77 = arith.constant 0 : index
    %101 = vector.load %arg9[%100, %c0_76, %c0_77] : memref<2x16x32xf32, #tpu.memory_space<vmem>>, vector<1x16x32xf32>
    %102 = vector.shape_cast %101 : vector<1x16x32xf32> to vector<16x32xf32>
    %103 = vector.broadcast %97 : i32 to vector<16x32xi32>
    %104 = arith.cmpi sge, %54, %103 : vector<16x32xi32>
    %105 = vector.broadcast %98 : i32 to vector<16x32xi32>
    %106 = arith.cmpi sle, %54, %105 : vector<16x32xi32>
    %107 = arith.andi %104, %106 : vector<16x32xi1>
    %cst_78 = arith.constant 0.000000e+00 : f32
    %108 = vector.broadcast %cst_78 : f32 to vector<16x32xf32>
    %109 = arith.select %107, %102, %108 : vector<16x32xi1>, vector<16x32xf32>
    %cst_79 = arith.constant dense<0xFF800000> : vector<32xf32>
    %110 = vector.multi_reduction <maximumf>, %109, %cst_79 [0] : vector<16x32xf32> to vector<32xf32>
    %111 = vector.shape_cast %110 : vector<32xf32> to vector<1x32xf32>
    %c2_i32 = arith.constant 2 : i32
    %112 = vector.broadcast %c2_i32 : i32 to vector<8x32xi32>
    %113 = arith.cmpi eq, %55, %112 : vector<8x32xi32>
    %114 = vector.shape_cast %111 : vector<1x32xf32> to vector<1x32xf32>
    %115 = vector.broadcast %114 : vector<1x32xf32> to vector<8x32xf32>
    %116 = arith.select %113, %115, %96 : vector<8x32xi1>, vector<8x32xf32>
    %c3 = arith.constant 3 : index
    %c0_80 = arith.constant 0 : index
    %117 = memref.load %arg1[%c3, %c0_80] : memref<8x2xi32, #tpu.memory_space<smem>>
    %c3_81 = arith.constant 3 : index
    %c1_82 = arith.constant 1 : index
    %118 = memref.load %arg1[%c3_81, %c1_82] : memref<8x2xi32, #tpu.memory_space<smem>>
    %c3_83 = arith.constant 3 : index
    %119 = memref.load %arg2[%c3_83] : memref<8xi32, #tpu.memory_space<smem>>
    %120 = arith.index_cast %119 : i32 to index
    %c0_84 = arith.constant 0 : index
    %c0_85 = arith.constant 0 : index
    %121 = vector.load %arg9[%120, %c0_84, %c0_85] : memref<2x16x32xf32, #tpu.memory_space<vmem>>, vector<1x16x32xf32>
    %122 = vector.shape_cast %121 : vector<1x16x32xf32> to vector<16x32xf32>
    %123 = vector.broadcast %117 : i32 to vector<16x32xi32>
    %124 = arith.cmpi sge, %54, %123 : vector<16x32xi32>
    %125 = vector.broadcast %118 : i32 to vector<16x32xi32>
    %126 = arith.cmpi sle, %54, %125 : vector<16x32xi32>
    %127 = arith.andi %124, %126 : vector<16x32xi1>
    %cst_86 = arith.constant 0.000000e+00 : f32
    %128 = vector.broadcast %cst_86 : f32 to vector<16x32xf32>
    %129 = arith.select %127, %122, %128 : vector<16x32xi1>, vector<16x32xf32>
    %cst_87 = arith.constant dense<0xFF800000> : vector<32xf32>
    %130 = vector.multi_reduction <maximumf>, %129, %cst_87 [0] : vector<16x32xf32> to vector<32xf32>
    %131 = vector.shape_cast %130 : vector<32xf32> to vector<1x32xf32>
    %c3_i32 = arith.constant 3 : i32
    %132 = vector.broadcast %c3_i32 : i32 to vector<8x32xi32>
    %133 = arith.cmpi eq, %55, %132 : vector<8x32xi32>
    %134 = vector.shape_cast %131 : vector<1x32xf32> to vector<1x32xf32>
    %135 = vector.broadcast %134 : vector<1x32xf32> to vector<8x32xf32>
    %136 = arith.select %133, %135, %116 : vector<8x32xi1>, vector<8x32xf32>
    %c4 = arith.constant 4 : index
    %c0_88 = arith.constant 0 : index
    %137 = memref.load %arg1[%c4, %c0_88] : memref<8x2xi32, #tpu.memory_space<smem>>
    %c4_89 = arith.constant 4 : index
    %c1_90 = arith.constant 1 : index
    %138 = memref.load %arg1[%c4_89, %c1_90] : memref<8x2xi32, #tpu.memory_space<smem>>
    %c4_91 = arith.constant 4 : index
    %139 = memref.load %arg2[%c4_91] : memref<8xi32, #tpu.memory_space<smem>>
    %140 = arith.index_cast %139 : i32 to index
    %c0_92 = arith.constant 0 : index
    %c0_93 = arith.constant 0 : index
    %141 = vector.load %arg9[%140, %c0_92, %c0_93] : memref<2x16x32xf32, #tpu.memory_space<vmem>>, vector<1x16x32xf32>
    %142 = vector.shape_cast %141 : vector<1x16x32xf32> to vector<16x32xf32>
    %143 = vector.broadcast %137 : i32 to vector<16x32xi32>
    %144 = arith.cmpi sge, %54, %143 : vector<16x32xi32>
    %145 = vector.broadcast %138 : i32 to vector<16x32xi32>
    %146 = arith.cmpi sle, %54, %145 : vector<16x32xi32>
    %147 = arith.andi %144, %146 : vector<16x32xi1>
    %cst_94 = arith.constant 0.000000e+00 : f32
    %148 = vector.broadcast %cst_94 : f32 to vector<16x32xf32>
    %149 = arith.select %147, %142, %148 : vector<16x32xi1>, vector<16x32xf32>
    %cst_95 = arith.constant dense<0xFF800000> : vector<32xf32>
    %150 = vector.multi_reduction <maximumf>, %149, %cst_95 [0] : vector<16x32xf32> to vector<32xf32>
    %151 = vector.shape_cast %150 : vector<32xf32> to vector<1x32xf32>
    %c4_i32 = arith.constant 4 : i32
    %152 = vector.broadcast %c4_i32 : i32 to vector<8x32xi32>
    %153 = arith.cmpi eq, %55, %152 : vector<8x32xi32>
    %154 = vector.shape_cast %151 : vector<1x32xf32> to vector<1x32xf32>
    %155 = vector.broadcast %154 : vector<1x32xf32> to vector<8x32xf32>
    %156 = arith.select %153, %155, %136 : vector<8x32xi1>, vector<8x32xf32>
    %c5 = arith.constant 5 : index
    %c0_96 = arith.constant 0 : index
    %157 = memref.load %arg1[%c5, %c0_96] : memref<8x2xi32, #tpu.memory_space<smem>>
    %c5_97 = arith.constant 5 : index
    %c1_98 = arith.constant 1 : index
    %158 = memref.load %arg1[%c5_97, %c1_98] : memref<8x2xi32, #tpu.memory_space<smem>>
    %c5_99 = arith.constant 5 : index
    %159 = memref.load %arg2[%c5_99] : memref<8xi32, #tpu.memory_space<smem>>
    %160 = arith.index_cast %159 : i32 to index
    %c0_100 = arith.constant 0 : index
    %c0_101 = arith.constant 0 : index
    %161 = vector.load %arg9[%160, %c0_100, %c0_101] : memref<2x16x32xf32, #tpu.memory_space<vmem>>, vector<1x16x32xf32>
    %162 = vector.shape_cast %161 : vector<1x16x32xf32> to vector<16x32xf32>
    %163 = vector.broadcast %157 : i32 to vector<16x32xi32>
    %164 = arith.cmpi sge, %54, %163 : vector<16x32xi32>
    %165 = vector.broadcast %158 : i32 to vector<16x32xi32>
    %166 = arith.cmpi sle, %54, %165 : vector<16x32xi32>
    %167 = arith.andi %164, %166 : vector<16x32xi1>
    %cst_102 = arith.constant 0.000000e+00 : f32
    %168 = vector.broadcast %cst_102 : f32 to vector<16x32xf32>
    %169 = arith.select %167, %162, %168 : vector<16x32xi1>, vector<16x32xf32>
    %cst_103 = arith.constant dense<0xFF800000> : vector<32xf32>
    %170 = vector.multi_reduction <maximumf>, %169, %cst_103 [0] : vector<16x32xf32> to vector<32xf32>
    %171 = vector.shape_cast %170 : vector<32xf32> to vector<1x32xf32>
    %c5_i32 = arith.constant 5 : i32
    %172 = vector.broadcast %c5_i32 : i32 to vector<8x32xi32>
    %173 = arith.cmpi eq, %55, %172 : vector<8x32xi32>
    %174 = vector.shape_cast %171 : vector<1x32xf32> to vector<1x32xf32>
    %175 = vector.broadcast %174 : vector<1x32xf32> to vector<8x32xf32>
    %176 = arith.select %173, %175, %156 : vector<8x32xi1>, vector<8x32xf32>
    %c6 = arith.constant 6 : index
    %c0_104 = arith.constant 0 : index
    %177 = memref.load %arg1[%c6, %c0_104] : memref<8x2xi32, #tpu.memory_space<smem>>
    %c6_105 = arith.constant 6 : index
    %c1_106 = arith.constant 1 : index
    %178 = memref.load %arg1[%c6_105, %c1_106] : memref<8x2xi32, #tpu.memory_space<smem>>
    %c6_107 = arith.constant 6 : index
    %179 = memref.load %arg2[%c6_107] : memref<8xi32, #tpu.memory_space<smem>>
    %180 = arith.index_cast %179 : i32 to index
    %c0_108 = arith.constant 0 : index
    %c0_109 = arith.constant 0 : index
    %181 = vector.load %arg9[%180, %c0_108, %c0_109] : memref<2x16x32xf32, #tpu.memory_space<vmem>>, vector<1x16x32xf32>
    %182 = vector.shape_cast %181 : vector<1x16x32xf32> to vector<16x32xf32>
    %183 = vector.broadcast %177 : i32 to vector<16x32xi32>
    %184 = arith.cmpi sge, %54, %183 : vector<16x32xi32>
    %185 = vector.broadcast %178 : i32 to vector<16x32xi32>
    %186 = arith.cmpi sle, %54, %185 : vector<16x32xi32>
    %187 = arith.andi %184, %186 : vector<16x32xi1>
    %cst_110 = arith.constant 0.000000e+00 : f32
    %188 = vector.broadcast %cst_110 : f32 to vector<16x32xf32>
    %189 = arith.select %187, %182, %188 : vector<16x32xi1>, vector<16x32xf32>
    %cst_111 = arith.constant dense<0xFF800000> : vector<32xf32>
    %190 = vector.multi_reduction <maximumf>, %189, %cst_111 [0] : vector<16x32xf32> to vector<32xf32>
    %191 = vector.shape_cast %190 : vector<32xf32> to vector<1x32xf32>
    %c6_i32 = arith.constant 6 : i32
    %192 = vector.broadcast %c6_i32 : i32 to vector<8x32xi32>
    %193 = arith.cmpi eq, %55, %192 : vector<8x32xi32>
    %194 = vector.shape_cast %191 : vector<1x32xf32> to vector<1x32xf32>
    %195 = vector.broadcast %194 : vector<1x32xf32> to vector<8x32xf32>
    %196 = arith.select %193, %195, %176 : vector<8x32xi1>, vector<8x32xf32>
    %c7 = arith.constant 7 : index
    %c0_112 = arith.constant 0 : index
    %197 = memref.load %arg1[%c7, %c0_112] : memref<8x2xi32, #tpu.memory_space<smem>>
    %c7_113 = arith.constant 7 : index
    %c1_114 = arith.constant 1 : index
    %198 = memref.load %arg1[%c7_113, %c1_114] : memref<8x2xi32, #tpu.memory_space<smem>>
    %c7_115 = arith.constant 7 : index
    %199 = memref.load %arg2[%c7_115] : memref<8xi32, #tpu.memory_space<smem>>
    %200 = arith.index_cast %199 : i32 to index
    %c0_116 = arith.constant 0 : index
    %c0_117 = arith.constant 0 : index
    %201 = vector.load %arg9[%200, %c0_116, %c0_117] : memref<2x16x32xf32, #tpu.memory_space<vmem>>, vector<1x16x32xf32>
    %202 = vector.shape_cast %201 : vector<1x16x32xf32> to vector<16x32xf32>
    %203 = vector.broadcast %197 : i32 to vector<16x32xi32>
    %204 = arith.cmpi sge, %54, %203 : vector<16x32xi32>
    %205 = vector.broadcast %198 : i32 to vector<16x32xi32>
    %206 = arith.cmpi sle, %54, %205 : vector<16x32xi32>
    %207 = arith.andi %204, %206 : vector<16x32xi1>
    %cst_118 = arith.constant 0.000000e+00 : f32
    %208 = vector.broadcast %cst_118 : f32 to vector<16x32xf32>
    %209 = arith.select %207, %202, %208 : vector<16x32xi1>, vector<16x32xf32>
    %cst_119 = arith.constant dense<0xFF800000> : vector<32xf32>
    %210 = vector.multi_reduction <maximumf>, %209, %cst_119 [0] : vector<16x32xf32> to vector<32xf32>
    %211 = vector.shape_cast %210 : vector<32xf32> to vector<1x32xf32>
    %c7_i32 = arith.constant 7 : i32
    %212 = vector.broadcast %c7_i32 : i32 to vector<8x32xi32>
    %213 = arith.cmpi eq, %55, %212 : vector<8x32xi32>
    %214 = vector.shape_cast %211 : vector<1x32xf32> to vector<1x32xf32>
    %215 = vector.broadcast %214 : vector<1x32xf32> to vector<8x32xf32>
    %216 = arith.select %213, %215, %196 : vector<8x32xi1>, vector<8x32xf32>
    %c0_120 = arith.constant 0 : index
    %c0_121 = arith.constant 0 : index
    %217 = vector.load %arg6[%c0_120, %c0_121] : memref<32x128xf32, #tpu.memory_space<vmem>>, vector<32x128xf32>
    %cst_122 = arith.constant dense<0.000000e+00> : vector<8x128xf32>
    %218 = tpu.matmul %216, %217, %cst_122 {dimension_numbers = #tpu.dot_dimension_numbers<[1], [0], [0], [1], [0, 0, 1, 1], [], []>} : vector<8x32xf32>, vector<32x128xf32>, vector<8x128xf32> -> vector<8x128xf32>
    %c0_123 = arith.constant 0 : index
    %c0_124 = arith.constant 0 : index
    %219 = vector.load %arg7[%c0_123, %c0_124] : memref<1x128xf32, #tpu.memory_space<vmem>>, vector<1x128xf32>
    %220 = vector.broadcast %219 : vector<1x128xf32> to vector<8x128xf32>
    %221 = arith.addf %218, %220 : vector<8x128xf32>
    %c0_125 = arith.constant 0 : index
    %c0_126 = arith.constant 0 : index
    %222 = vector.load %arg8[%c0_125, %c0_126] : memref<8x128xf32, #tpu.memory_space<vmem>>, vector<8x128xf32>
    tpu.vector_store %arg8[%c0_125, %c0_126], %221 {strides = array<i32>} : memref<8x128xf32, #tpu.memory_space<vmem>>, vector<8x128xf32>,
    return
  }
  func.func @transform_0(%arg0: i32, %arg1: memref<8x2xi32, #tpu.memory_space<smem>>, %arg2: memref<8xi32, #tpu.memory_space<smem>>) -> (i32, i32, i32) {
    %c0_i32 = arith.constant 0 : i32
    %c0_i32_0 = arith.constant 0 : i32
    %c0_i32_1 = arith.constant 0 : i32
    %c0_i32_2 = arith.constant 0 : i32
    return %c0_i32, %c0_i32_0, %c0_i32_1 : i32, i32, i32
  }
  func.func @transform_1(%arg0: i32, %arg1: memref<8x2xi32, #tpu.memory_space<smem>>, %arg2: memref<8xi32, #tpu.memory_space<smem>>) -> (i32, i32, i32) {
    %c0_i32 = arith.constant 0 : i32
    %c0_i32_0 = arith.constant 0 : i32
    %c0_i32_1 = arith.constant 0 : i32
    %c0_i32_2 = arith.constant 0 : i32
    return %c0_i32, %c0_i32_0, %c0_i32_1 : i32, i32, i32
  }
  func.func @transform_2(%arg0: i32, %arg1: memref<8x2xi32, #tpu.memory_space<smem>>, %arg2: memref<8xi32, #tpu.memory_space<smem>>) -> (i32, i32) {
    %c0_i32 = arith.constant 0 : i32
    %c0_i32_0 = arith.constant 0 : i32
    %c0_i32_1 = arith.constant 0 : i32
    return %c0_i32, %c0_i32_0 : i32, i32
  }
  func.func @transform_3(%arg0: i32, %arg1: memref<8x2xi32, #tpu.memory_space<smem>>, %arg2: memref<8xi32, #tpu.memory_space<smem>>) -> (i32, i32) {
    %c0_i32 = arith.constant 0 : i32
    %c0_i32_0 = arith.constant 0 : i32
    %c0_i32_1 = arith.constant 0 : i32
    return %c0_i32, %c0_i32_0 : i32, i32
  }
  func.func @transform_4(%arg0: i32, %arg1: memref<8x2xi32, #tpu.memory_space<smem>>, %arg2: memref<8xi32, #tpu.memory_space<smem>>) -> (i32, i32) {
    %c0_i32 = arith.constant 0 : i32
    %c0_i32_0 = arith.constant 0 : i32
    %c0_i32_1 = arith.constant 0 : i32
    return %c0_i32, %c0_i32_0 : i32, i32
  }
  func.func @transform_5(%arg0: i32, %arg1: memref<8x2xi32, #tpu.memory_space<smem>>, %arg2: memref<8xi32, #tpu.memory_space<smem>>) -> (i32, i32) {
    %c0_i32 = arith.constant 0 : i32
    %c0_i32_0 = arith.constant 0 : i32
    %c0_i32_1 = arith.constant 0 : i32
    return %c0_i32, %c0_i32_0 : i32, i32
  }
}

</mosaic_0001>

<llo_original>
// kernel: tpu_custom_call.1
$region0: #{tpu_custom_call.1}
  #allocation0 [shape = 'u32[]', space=smem, size = 0x4, offset = 0x4, fixed_abs, tag = 'smem constant byte address 0x4 - core index']
  #allocation1 [shape = 'u32[72,128]{1,0:T(1,128)}', space=vmem, size = 0x9000, scoped, tag = 'internal scratch']
  #allocation2 [shape = 'f32[2,16,32]{2,1,0:T(8,128)}', space=vmem, size = 0x4000, scoped, tag = 'scratch operand']
  #allocation3 [shape = 's32[1]{0}', space=sflag, size = 0x4, scoped, tag = 'scoped memory for tpu_custom_call.1']
  #allocation4 [shape = 'u8[4096]{0}', space=smem, size = 0x1000, scoped, tag = 'prefetched SMEM operand 0']
  #allocation5 [shape = 'u8[512]{0}', space=smem, size = 0x200, scoped, tag = 'prefetched SMEM operand 1']
  %s0 = inlined_call_operand.vmem [shape: s32[8,2], index: 0, kind: input, shape index: {}]
  %s1 = inlined_call_operand.hbm [shape: s32[8], index: 1, kind: input, shape index: {}]
  %s2 = inlined_call_operand.vmem [shape: f32[2,18,32], index: 2, kind: input, shape index: {}]
  %s3 = inlined_call_operand.vmem [shape: f32[3,32,32], index: 3, kind: input, shape index: {}]
  %s4 = inlined_call_operand.vmem [shape: f32[1,32], index: 4, kind: input, shape index: {}]
  %s5 = inlined_call_operand.hbm [shape: f32[32,128], index: 5, kind: input, shape index: {}]
  %s6 = inlined_call_operand.vmem [shape: f32[1,128], index: 6, kind: input, shape index: {}]
  %s7 = inlined_call_operand.hbm [shape: f32[8,128], index: 7, kind: output, shape index: {}]
  %s8 = sld [smem:[#allocation0]]
  $region34: #{tpu_custom_call.1} parent=0
    _
  %s10 = ssub.s32 1, %s8
  %s11 = scalar_select 0, %s10, %s8
  %s13 = sshll.u32 %s0, 4
  %s14 = int_to_ptr.vmem [resolvable:$true] %s13
  %16 = dma.vmem_to_smem %s14, 128, [#allocation4], [#allocation3]
  %s18 = sshll.u32 %s1, 4
  %s19 = int_to_ptr.hbm [resolvable:$true] %s18
  %21 = dma.hbm_to_smem %s19, 16, [#allocation5], [#allocation3]
  %23 = dma.done [#allocation3], 144
  %24 = sfence
  $region1: #{tpu_custom_call.1} parent=0
    #allocation6 [shape = 'u8[16384]{0}', space=vmem, size = 0x4000, scoped, tag = 'input window, operand 5, single buffered']
    #allocation7 [shape = 's32[1]{0}', space=sflag, size = 0x4, scoped, tag = 'scoped memory for tpu_custom_call.1']
    #allocation8 [shape = 's32[1]{0}', space=sflag, size = 0x4, scoped, tag = 'scoped memory for tpu_custom_call.1']
    #allocation9 [shape = 'u8[4096]{0}', space=vmem, size = 0x1000, scoped, tag = 'output window, operand 0, single buffered']
    %25 = vsyncpa [#allocation7], 0
    %26 = vsyncpa [#allocation8], 0
    // Predicated region
    $region2: #{tpu_custom_call.1} parent=1 // pred_check
      _
    $region3: #{tpu_custom_call.1} parent=1 // pred_check_branch
      %28 = sbr.rel (0) target = $region5
    $region4: #{tpu_custom_call.1} parent=1 // pred_region
      _
    $region5: #{tpu_custom_call.1} parent=1 // pred_fallthru
      _
    // Predicated region
    $region6: #{tpu_custom_call.1} parent=1 // pred_check
      _
    $region7: #{tpu_custom_call.1} parent=1 // pred_check_branch
      %30 = sbr.rel (0) target = $region9
    $region8: #{tpu_custom_call.1} parent=1 // pred_region
      _
    $region9: #{tpu_custom_call.1} parent=1 // pred_fallthru
      _
    // Predicated region
    $region10: #{tpu_custom_call.1} parent=1 // pred_check
      _
    $region11: #{tpu_custom_call.1} parent=1 // pred_check_branch
      %32 = sbr.rel (0) target = $region13
    $region12: #{tpu_custom_call.1} parent=1 // pred_region
      _
    $region13: #{tpu_custom_call.1} parent=1 // pred_fallthru
      _
    // Predicated region
    $region14: #{tpu_custom_call.1} parent=1 // pred_check
      _
    $region15: #{tpu_custom_call.1} parent=1 // pred_check_branch
      %34 = sbr.rel (0) target = $region17
    $region16: #{tpu_custom_call.1} parent=1 // pred_region
      %36 = vsyncadd [#allocation7], 0
      %s37 = sshll.u32 %s5, 4
      %s38 = int_to_ptr.hbm [resolvable:$true] %s37
      %s39 = sshll.u32 [#allocation6], 4
      %s40 = int_to_ptr.vmem [resolvable:$true] %s39
      %45 = dma.hbm_to_vmem [thread:$0]  %s38, 512, %s40, [#allocation7], 128, 128, 8
    $region17: #{tpu_custom_call.1} parent=1 // pred_fallthru
      _
    // Predicated region
    $region18: #{tpu_custom_call.1} parent=1 // pred_check
      _
    $region19: #{tpu_custom_call.1} parent=1 // pred_check_branch
      %47 = sbr.rel (0) target = $region21
    $region20: #{tpu_custom_call.1} parent=1 // pred_region
      _
    $region21: #{tpu_custom_call.1} parent=1 // pred_fallthru
      _
    // Predicated region
    $region22: #{tpu_custom_call.1} parent=1 // pred_check
      _
    $region23: #{tpu_custom_call.1} parent=1 // pred_check_branch
      %49 = sbr.rel (0) target = $region25
    $region24: #{tpu_custom_call.1} parent=1 // pred_region
      %51 = dma.done [#allocation7], 512
    $region25: #{tpu_custom_call.1} parent=1 // pred_fallthru
      _
    %v52 = vld [vmem:[%s2] sm:$0xff]
    %v53 = vld [vmem:[%s2 + $0x8] sm:$0xff]
    %v54 = vld [vmem:[%s3] sm:$0xff]
    %v55 = vld [vmem:[%s3 + $0x8] sm:$0xff]
    %v56 = vld [vmem:[%s3 + $0x10] sm:$0xff]
    %v57 = vld [vmem:[%s3 + $0x18] sm:$0xff]
    %v58 = vld [vmem:[%s2 + $0x1] sm:$0xff]
    %v59 = vld [vmem:[%s2 + $0x9] sm:$0xff]
    %s60 = scalar_lea.vmem %s3, 32
    %v61 = vld [vmem:[%s60] sm:$0xff]
    %v62 = vld [vmem:[%s60 + $0x8] sm:$0xff]
    %v63 = vld [vmem:[%s60 + $0x10] sm:$0xff]
    %v64 = vld [vmem:[%s60 + $0x18] sm:$0xff]
    %vm65 = vcmask 261120
    %v67 = vsel %vm65, %v58, 0
    %v70 = vsel %vm65, %v59, 0
    %72 = vmatpush.msra.mxu0 0.0
    %73 = vmatpush.msra.mxu0 0.0
    %74 = vmatpush.msra.mxu0 0.0
    %75 = vmatpush.msra.mxu0 0.0
    %76 = vmatpush.msra.mxu0 0.0
    %77 = vmatpush.msra.mxu0 0.0
    %78 = vmatpush.msra.mxu0 0.0
    %79 = vmatpush.msra.mxu0 0.0
    %80 = vmatpush.msra.mxu0 0.0
    %81 = vmatpush.msra.mxu0 0.0
    %82 = vmatpush.msra.mxu0 0.0
    %83 = vmatpush.msra.mxu0 0.0
    %84 = vmatpush.msra.mxu0 %v64
    %85 = vmatpush.msra.mxu0 %v63
    %86 = vmatpush.msra.mxu0 %v62
    %87 = vmatpush.msra.mxu0 %v61
    %88 = vmatmul.f32.gmra.mxu0 %v67
    %v89 = vpop.f32.mrf.mxu0
    %v90 = vadd.f32 0.0, %v89
    %91 = vmatmul.f32.gmra.mxu0 %v70
    %v92 = vpop.f32.mrf.mxu0
    %v93 = vadd.f32 0.0, %v92
    %94 = vdwg.mxu0
    %v96 = vsel %vm65, %v52, 0
    %v99 = vsel %vm65, %v53, 0
    %101 = vmatpush.msra.mxu0 0.0
    %102 = vmatpush.msra.mxu0 0.0
    %103 = vmatpush.msra.mxu0 0.0
    %104 = vmatpush.msra.mxu0 0.0
    %105 = vmatpush.msra.mxu0 0.0
    %106 = vmatpush.msra.mxu0 0.0
    %107 = vmatpush.msra.mxu0 0.0
    %108 = vmatpush.msra.mxu0 0.0
    %109 = vmatpush.msra.mxu0 0.0
    %110 = vmatpush.msra.mxu0 0.0
    %111 = vmatpush.msra.mxu0 0.0
    %112 = vmatpush.msra.mxu0 0.0
    %113 = vmatpush.msra.mxu0 %v57
    %114 = vmatpush.msra.mxu0 %v56
    %115 = vmatpush.msra.mxu0 %v55
    %116 = vmatpush.msra.mxu0 %v54
    %117 = vmatmul.f32.gmra.mxu0 %v96
    %v118 = vpop.f32.mrf.mxu0
    %v119 = vadd.f32 %v90, %v118
    %120 = vmatmul.f32.gmra.mxu0 %v99
    %v121 = vpop.f32.mrf.mxu0
    %v122 = vadd.f32 %v93, %v121
    %123 = vdwg.mxu0
    %v124 = vld [vmem:[%s2 + $0x2] sm:$0xff]
    %v125 = vld [vmem:[%s2 + $0xa] sm:$0xff]
    %s126 = scalar_lea.vmem %s3, 64
    %v127 = vld [vmem:[%s126] sm:$0xff]
    %v128 = vld [vmem:[%s126 + $0x8] sm:$0xff]
    %v129 = vld [vmem:[%s126 + $0x10] sm:$0xff]
    %v130 = vld [vmem:[%s126 + $0x18] sm:$0xff]
    %v132 = vsel %vm65, %v124, 0
    %v135 = vsel %vm65, %v125, 0
    %137 = vmatpush.msra.mxu0 0.0
    %138 = vmatpush.msra.mxu0 0.0
    %139 = vmatpush.msra.mxu0 0.0
    %140 = vmatpush.msra.mxu0 0.0
    %141 = vmatpush.msra.mxu0 0.0
    %142 = vmatpush.msra.mxu0 0.0
    %143 = vmatpush.msra.mxu0 0.0
    %144 = vmatpush.msra.mxu0 0.0
    %145 = vmatpush.msra.mxu0 0.0
    %146 = vmatpush.msra.mxu0 0.0
    %147 = vmatpush.msra.mxu0 0.0
    %148 = vmatpush.msra.mxu0 0.0
    %149 = vmatpush.msra.mxu0 %v130
    %150 = vmatpush.msra.mxu0 %v129
    %151 = vmatpush.msra.mxu0 %v128
    %152 = vmatpush.msra.mxu0 %v127
    %153 = vmatmul.f32.gmra.mxu0 %v132
    %v154 = vpop.f32.mrf.mxu0
    %v155 = vadd.f32 0.0, %v154
    %156 = vmatmul.f32.gmra.mxu0 %v135
    %v157 = vpop.f32.mrf.mxu0
    %v158 = vadd.f32 0.0, %v157
    %159 = vdwg.mxu0
    %v160 = vadd.f32 %v119, %v155
    %v161 = vadd.f32 %v122, %v158
    %v162 = vld [vmem:[%s4] sm:$0x1]
    %v164 = vperm.slane %v162, 0
    %v166 = vadd.f32 %v160, %v164
    %v167 = vadd.f32 %v161, %v164
    %v168 = vmax.f32 %v166, 0.0
    %v169 = vmax.f32 %v167, 0.0
    %170 = vst.msk [vmem:[#allocation2] sm:$0xff] %vm65, %v168
    %171 = vst.msk [vmem:[#allocation2 + $0x8] sm:$0xff] %vm65, %v169
    %s172 = scalar_lea.vmem %s2, 24
    %v173 = vld [vmem:[%s172] sm:$0xff]
    %v174 = vld [vmem:[%s172 + $0x8] sm:$0xff]
    %v175 = vld [vmem:[%s3] sm:$0xff]
    %v176 = vld [vmem:[%s3 + $0x8] sm:$0xff]
    %v177 = vld [vmem:[%s3 + $0x10] sm:$0xff]
    %v178 = vld [vmem:[%s3 + $0x18] sm:$0xff]
    %v179 = vld [vmem:[%s172 + $0x1] sm:$0xff]
    %v180 = vld [vmem:[%s172 + $0x9] sm:$0xff]
    %v181 = vld [vmem:[%s60] sm:$0xff]
    %v182 = vld [vmem:[%s60 + $0x8] sm:$0xff]
    %v183 = vld [vmem:[%s60 + $0x10] sm:$0xff]
    %v184 = vld [vmem:[%s60 + $0x18] sm:$0xff]
    %v186 = vsel %vm65, %v179, 0
    %v189 = vsel %vm65, %v180, 0
    %191 = vmatpush.msra.mxu0 0.0
    %192 = vmatpush.msra.mxu0 0.0
    %193 = vmatpush.msra.mxu0 0.0
    %194 = vmatpush.msra.mxu0 0.0
    %195 = vmatpush.msra.mxu0 0.0
    %196 = vmatpush.msra.mxu0 0.0
    %197 = vmatpush.msra.mxu0 0.0
    %198 = vmatpush.msra.mxu0 0.0
    %199 = vmatpush.msra.mxu0 0.0
    %200 = vmatpush.msra.mxu0 0.0
    %201 = vmatpush.msra.mxu0 0.0
    %202 = vmatpush.msra.mxu0 0.0
    %203 = vmatpush.msra.mxu0 %v184
    %204 = vmatpush.msra.mxu0 %v183
    %205 = vmatpush.msra.mxu0 %v182
    %206 = vmatpush.msra.mxu0 %v181
    %207 = vmatmul.f32.gmra.mxu0 %v186
    %v208 = vpop.f32.mrf.mxu0
    %v209 = vadd.f32 0.0, %v208
    %210 = vmatmul.f32.gmra.mxu0 %v189
    %v211 = vpop.f32.mrf.mxu0
    %v212 = vadd.f32 0.0, %v211
    %213 = vdwg.mxu0
    %v215 = vsel %vm65, %v173, 0
    %v218 = vsel %vm65, %v174, 0
    %220 = vmatpush.msra.mxu0 0.0
    %221 = vmatpush.msra.mxu0 0.0
    %222 = vmatpush.msra.mxu0 0.0
    %223 = vmatpush.msra.mxu0 0.0
    %224 = vmatpush.msra.mxu0 0.0
    %225 = vmatpush.msra.mxu0 0.0
    %226 = vmatpush.msra.mxu0 0.0
    %227 = vmatpush.msra.mxu0 0.0
    %228 = vmatpush.msra.mxu0 0.0
    %229 = vmatpush.msra.mxu0 0.0
    %230 = vmatpush.msra.mxu0 0.0
    %231 = vmatpush.msra.mxu0 0.0
    %232 = vmatpush.msra.mxu0 %v178
    %233 = vmatpush.msra.mxu0 %v177
    %234 = vmatpush.msra.mxu0 %v176
    %235 = vmatpush.msra.mxu0 %v175
    %236 = vmatmul.f32.gmra.mxu0 %v215
    %v237 = vpop.f32.mrf.mxu0
    %v238 = vadd.f32 %v209, %v237
    %239 = vmatmul.f32.gmra.mxu0 %v218
    %v240 = vpop.f32.mrf.mxu0
    %v241 = vadd.f32 %v212, %v240
    %242 = vdwg.mxu0
    %v243 = vld [vmem:[%s172 + $0x2] sm:$0xff]
    %v244 = vld [vmem:[%s172 + $0xa] sm:$0xff]
    %v245 = vld [vmem:[%s126] sm:$0xff]
    %v246 = vld [vmem:[%s126 + $0x8] sm:$0xff]
    %v247 = vld [vmem:[%s126 + $0x10] sm:$0xff]
    %v248 = vld [vmem:[%s126 + $0x18] sm:$0xff]
    %v250 = vsel %vm65, %v243, 0
    %v253 = vsel %vm65, %v244, 0
    %255 = vmatpush.msra.mxu0 0.0
    %256 = vmatpush.msra.mxu0 0.0
    %257 = vmatpush.msra.mxu0 0.0
    %258 = vmatpush.msra.mxu0 0.0
    %259 = vmatpush.msra.mxu0 0.0
    %260 = vmatpush.msra.mxu0 0.0
    %261 = vmatpush.msra.mxu0 0.0
    %262 = vmatpush.msra.mxu0 0.0
    %263 = vmatpush.msra.mxu0 0.0
    %264 = vmatpush.msra.mxu0 0.0
    %265 = vmatpush.msra.mxu0 0.0
    %266 = vmatpush.msra.mxu0 0.0
    %267 = vmatpush.msra.mxu0 %v248
    %268 = vmatpush.msra.mxu0 %v247
    %269 = vmatpush.msra.mxu0 %v246
    %270 = vmatpush.msra.mxu0 %v245
    %271 = vmatmul.f32.gmra.mxu0 %v250
    %v272 = vpop.f32.mrf.mxu0
    %v273 = vadd.f32 0.0, %v272
    %274 = vmatmul.f32.gmra.mxu0 %v253
    %v275 = vpop.f32.mrf.mxu0
    %v276 = vadd.f32 0.0, %v275
    %277 = vdwg.mxu0
    %v278 = vadd.f32 %v238, %v273
    %v279 = vadd.f32 %v241, %v276
    %v280 = vld [vmem:[%s4] sm:$0x1]
    %v282 = vperm.slane %v280, 0
    %v284 = vadd.f32 %v278, %v282
    %v285 = vadd.f32 %v279, %v282
    %v286 = vmax.f32 %v284, 0.0
    %v287 = vmax.f32 %v285, 0.0
    %s288 = scalar_lea.vmem [#allocation2], 16
    %289 = vst.msk [vmem:[%s288] sm:$0xff] %vm65, %v286
    %290 = vst.msk [vmem:[%s288 + $0x8] sm:$0xff] %vm65, %v287
    %v291 = vlaneseq
    %v292 = vshrl.u32 %v291, 7
    %v293 = vadd.s32 %v292, 8
    %s294 = sld [smem:[#allocation4]]
    %s295 = sld [smem:[#allocation4 + $0x1]]
    %s296 = sld [smem:[#allocation5]]
    %s297 = smul.u32 %s296, 16
    %s298 = scalar_lea.vmem [#allocation2], %s297
    %v299 = vld [vmem:[%s298] sm:$0xff]
    %v300 = vld [vmem:[%s298 + $0x8] sm:$0xff]
    %v301 = vstv %s294
    %vm302 = vcmp.ge.s32.totalorder %v292, %v301
    %vm303 = vcmp.ge.s32.totalorder %v293, %v301
    %v304 = vstv %s295
    %vm305 = vcmp.le.s32.totalorder %v292, %v304
    %vm306 = vcmp.le.s32.totalorder %v293, %v304
    %vm307 = vmand %vm302, %vm305
    %vm308 = vmand %vm303, %vm306
    %v309 = vsel %vm307, %v299, 0.0
    %v310 = vsel %vm308, %v300, 0.0
    %v311 = vsel %vm65, %v309, -inf
    %v312 = vsel %vm65, %v310, -inf
    %v313 = vmax.f32 %v311, %v312
    %v314 = vrot.slane %v313, 4
    %v315 = vmax.f32 %v313, %v314
    %v316 = vrot.slane %v315, 2
    %v317 = vmax.f32 %v315, %v316
    %v318 = vrot.slane %v317, 1
    %v319 = vmax.f32 %v317, %v318
    %vm320 = vcmp.eq.s32.totalorder %v292, 0
    %v321 = vsel %vm320, %v319, 0.0
    %s322 = sld [smem:[#allocation4 + $0x80]]
    %s323 = sld [smem:[#allocation4 + $0x81]]
    %s324 = sld [smem:[#allocation5 + $0x1]]
    %s325 = smul.u32 %s324, 16
    %s326 = scalar_lea.vmem [#allocation2], %s325
    %v327 = vld [vmem:[%s326] sm:$0xff]
    %v328 = vld [vmem:[%s326 + $0x8] sm:$0xff]
    %v329 = vstv %s322
    %vm330 = vcmp.ge.s32.totalorder %v292, %v329
    %vm331 = vcmp.ge.s32.totalorder %v293, %v329
    %v332 = vstv %s323
    %vm333 = vcmp.le.s32.totalorder %v292, %v332
    %vm334 = vcmp.le.s32.totalorder %v293, %v332
    %vm335 = vmand %vm330, %vm333
    %vm336 = vmand %vm331, %vm334
    %v337 = vsel %vm335, %v327, 0.0
    %v338 = vsel %vm336, %v328, 0.0
    %v339 = vsel %vm65, %v337, -inf
    %v340 = vsel %vm65, %v338, -inf
    %v341 = vmax.f32 %v339, %v340
    %v342 = vrot.slane %v341, 4
    %v343 = vmax.f32 %v341, %v342
    %v344 = vrot.slane %v343, 2
    %v345 = vmax.f32 %v343, %v344
    %v346 = vrot.slane %v345, 1
    %v347 = vmax.f32 %v345, %v346
    %vm348 = vcmp.eq.s32.totalorder %v292, 1
    %v349 = vsel %vm348, %v347, %v321
    %s350 = sld [smem:[#allocation4 + $0x100]]
    %s351 = sld [smem:[#allocation4 + $0x101]]
    %s352 = sld [smem:[#allocation5 + $0x2]]
    %s353 = smul.u32 %s352, 16
    %s354 = scalar_lea.vmem [#allocation2], %s353
    %v355 = vld [vmem:[%s354] sm:$0xff]
    %v356 = vld [vmem:[%s354 + $0x8] sm:$0xff]
    %v357 = vstv %s350
    %vm358 = vcmp.ge.s32.totalorder %v292, %v357
    %vm359 = vcmp.ge.s32.totalorder %v293, %v357
    %v360 = vstv %s351
    %vm361 = vcmp.le.s32.totalorder %v292, %v360
    %vm362 = vcmp.le.s32.totalorder %v293, %v360
    %vm363 = vmand %vm358, %vm361
    %vm364 = vmand %vm359, %vm362
    %v365 = vsel %vm363, %v355, 0.0
    %v366 = vsel %vm364, %v356, 0.0
    %v367 = vsel %vm65, %v365, -inf
    %v368 = vsel %vm65, %v366, -inf
    %v369 = vmax.f32 %v367, %v368
    %v370 = vrot.slane %v369, 4
    %v371 = vmax.f32 %v369, %v370
    %v372 = vrot.slane %v371, 2
    %v373 = vmax.f32 %v371, %v372
    %v374 = vrot.slane %v373, 1
    %v375 = vmax.f32 %v373, %v374
    %vm376 = vcmp.eq.s32.totalorder %v292, 2
    %v377 = vsel %vm376, %v375, %v349
    %s378 = sld [smem:[#allocation4 + $0x180]]
    %s379 = sld [smem:[#allocation4 + $0x181]]
    %s380 = sld [smem:[#allocation5 + $0x3]]
    %s381 = smul.u32 %s380, 16
    %s382 = scalar_lea.vmem [#allocation2], %s381
    %v383 = vld [vmem:[%s382] sm:$0xff]
    %v384 = vld [vmem:[%s382 + $0x8] sm:$0xff]
    %v385 = vstv %s378
    %vm386 = vcmp.ge.s32.totalorder %v292, %v385
    %vm387 = vcmp.ge.s32.totalorder %v293, %v385
    %v388 = vstv %s379
    %vm389 = vcmp.le.s32.totalorder %v292, %v388
    %vm390 = vcmp.le.s32.totalorder %v293, %v388
    %vm391 = vmand %vm386, %vm389
    %vm392 = vmand %vm387, %vm390
    %v393 = vsel %vm391, %v383, 0.0
    %v394 = vsel %vm392, %v384, 0.0
    %v395 = vsel %vm65, %v393, -inf
    %v396 = vsel %vm65, %v394, -inf
    %v397 = vmax.f32 %v395, %v396
    %v398 = vrot.slane %v397, 4
    %v399 = vmax.f32 %v397, %v398
    %v400 = vrot.slane %v399, 2
    %v401 = vmax.f32 %v399, %v400
    %v402 = vrot.slane %v401, 1
    %v403 = vmax.f32 %v401, %v402
    %vm404 = vcmp.eq.s32.totalorder %v292, 3
    %v405 = vsel %vm404, %v403, %v377
    %s406 = sld [smem:[#allocation4 + $0x200]]
    %s407 = sld [smem:[#allocation4 + $0x201]]
    %s408 = sld [smem:[#allocation5 + $0x4]]
    %s409 = smul.u32 %s408, 16
    %s410 = scalar_lea.vmem [#allocation2], %s409
    %v411 = vld [vmem:[%s410] sm:$0xff]
    %v412 = vld [vmem:[%s410 + $0x8] sm:$0xff]
    %v413 = vstv %s406
    %vm414 = vcmp.ge.s32.totalorder %v292, %v413
    %vm415 = vcmp.ge.s32.totalorder %v293, %v413
    %v416 = vstv %s407
    %vm417 = vcmp.le.s32.totalorder %v292, %v416
    %vm418 = vcmp.le.s32.totalorder %v293, %v416
    %vm419 = vmand %vm414, %vm417
    %vm420 = vmand %vm415, %vm418
    %v421 = vsel %vm419, %v411, 0.0
    %v422 = vsel %vm420, %v412, 0.0
    %v423 = vsel %vm65, %v421, -inf
    %v424 = vsel %vm65, %v422, -inf
    %v425 = vmax.f32 %v423, %v424
    %v426 = vrot.slane %v425, 4
    %v427 = vmax.f32 %v425, %v426
    %v428 = vrot.slane %v427, 2
    %v429 = vmax.f32 %v427, %v428
    %v430 = vrot.slane %v429, 1
    %v431 = vmax.f32 %v429, %v430
    %vm432 = vcmp.eq.s32.totalorder %v292, 4
    %v433 = vsel %vm432, %v431, %v405
    %s434 = sld [smem:[#allocation4 + $0x280]]
    %s435 = sld [smem:[#allocation4 + $0x281]]
    %s436 = sld [smem:[#allocation5 + $0x5]]
    %s437 = smul.u32 %s436, 16
    %s438 = scalar_lea.vmem [#allocation2], %s437
    %v439 = vld [vmem:[%s438] sm:$0xff]
    %v440 = vld [vmem:[%s438 + $0x8] sm:$0xff]
    %v441 = vstv %s434
    %vm442 = vcmp.ge.s32.totalorder %v292, %v441
    %vm443 = vcmp.ge.s32.totalorder %v293, %v441
    %v444 = vstv %s435
    %vm445 = vcmp.le.s32.totalorder %v292, %v444
    %vm446 = vcmp.le.s32.totalorder %v293, %v444
    %vm447 = vmand %vm442, %vm445
    %vm448 = vmand %vm443, %vm446
    %v449 = vsel %vm447, %v439, 0.0
    %v450 = vsel %vm448, %v440, 0.0
    %v451 = vsel %vm65, %v449, -inf
    %v452 = vsel %vm65, %v450, -inf
    %v453 = vmax.f32 %v451, %v452
    %v454 = vrot.slane %v453, 4
    %v455 = vmax.f32 %v453, %v454
    %v456 = vrot.slane %v455, 2
    %v457 = vmax.f32 %v455, %v456
    %v458 = vrot.slane %v457, 1
    %v459 = vmax.f32 %v457, %v458
    %vm460 = vcmp.eq.s32.totalorder %v292, 5
    %v461 = vsel %vm460, %v459, %v433
    %s462 = sld [smem:[#allocation4 + $0x300]]
    %s463 = sld [smem:[#allocation4 + $0x301]]
    %s464 = sld [smem:[#allocation5 + $0x6]]
    %s465 = smul.u32 %s464, 16
    %s466 = scalar_lea.vmem [#allocation2], %s465
    %v467 = vld [vmem:[%s466] sm:$0xff]
    %v468 = vld [vmem:[%s466 + $0x8] sm:$0xff]
    %v469 = vstv %s462
    %vm470 = vcmp.ge.s32.totalorder %v292, %v469
    %vm471 = vcmp.ge.s32.totalorder %v293, %v469
    %v472 = vstv %s463
    %vm473 = vcmp.le.s32.totalorder %v292, %v472
    %vm474 = vcmp.le.s32.totalorder %v293, %v472
    %vm475 = vmand %vm470, %vm473
    %vm476 = vmand %vm471, %vm474
    %v477 = vsel %vm475, %v467, 0.0
    %v478 = vsel %vm476, %v468, 0.0
    %v479 = vsel %vm65, %v477, -inf
    %v480 = vsel %vm65, %v478, -inf
    %v481 = vmax.f32 %v479, %v480
    %v482 = vrot.slane %v481, 4
    %v483 = vmax.f32 %v481, %v482
    %v484 = vrot.slane %v483, 2
    %v485 = vmax.f32 %v483, %v484
    %v486 = vrot.slane %v485, 1
    %v487 = vmax.f32 %v485, %v486
    %vm488 = vcmp.eq.s32.totalorder %v292, 6
    %v489 = vsel %vm488, %v487, %v461
    %s490 = sld [smem:[#allocation4 + $0x380]]
    %s491 = sld [smem:[#allocation4 + $0x381]]
    %s492 = sld [smem:[#allocation5 + $0x7]]
    %s493 = smul.u32 %s492, 16
    %s494 = scalar_lea.vmem [#allocation2], %s493
    %v495 = vld [vmem:[%s494] sm:$0xff]
    %v496 = vld [vmem:[%s494 + $0x8] sm:$0xff]
    %v497 = vstv %s490
    %vm498 = vcmp.ge.s32.totalorder %v292, %v497
    %vm499 = vcmp.ge.s32.totalorder %v293, %v497
    %v500 = vstv %s491
    %vm501 = vcmp.le.s32.totalorder %v292, %v500
    %vm502 = vcmp.le.s32.totalorder %v293, %v500
    %vm503 = vmand %vm498, %vm501
    %vm504 = vmand %vm499, %vm502
    %v505 = vsel %vm503, %v495, 0.0
    %v506 = vsel %vm504, %v496, 0.0
    %v507 = vsel %vm65, %v505, -inf
    %v508 = vsel %vm65, %v506, -inf
    %v509 = vmax.f32 %v507, %v508
    %v510 = vrot.slane %v509, 4
    %v511 = vmax.f32 %v509, %v510
    %v512 = vrot.slane %v511, 2
    %v513 = vmax.f32 %v511, %v512
    %v514 = vrot.slane %v513, 1
    %v515 = vmax.f32 %v513, %v514
    %vm516 = vcmp.eq.s32.totalorder %v292, 7
    %v517 = vsel %vm516, %v515, %v489
    %v518 = vld [vmem:[#allocation6] sm:$0xff]
    %v519 = vld [vmem:[#allocation6 + $0x8] sm:$0xff]
    %v520 = vld [vmem:[#allocation6 + $0x10] sm:$0xff]
    %v521 = vld [vmem:[#allocation6 + $0x18] sm:$0xff]
    %v522 = vld [vmem:[%s6] sm:$0x1]
    %v524 = vperm.slane %v522, 0
    %v527 = vsel %vm65, %v517, 0
    %529 = vmatpush.msra.mxu0 0.0
    %530 = vmatpush.msra.mxu0 0.0
    %531 = vmatpush.msra.mxu0 0.0
    %532 = vmatpush.msra.mxu0 0.0
    %533 = vmatpush.msra.mxu0 0.0
    %534 = vmatpush.msra.mxu0 0.0
    %535 = vmatpush.msra.mxu0 0.0
    %536 = vmatpush.msra.mxu0 0.0
    %537 = vmatpush.msra.mxu0 0.0
    %538 = vmatpush.msra.mxu0 0.0
    %539 = vmatpush.msra.mxu0 0.0
    %540 = vmatpush.msra.mxu0 0.0
    %541 = vmatpush.msra.mxu0 %v521
    %542 = vmatpush.msra.mxu0 %v520
    %543 = vmatpush.msra.mxu0 %v519
    %544 = vmatpush.msra.mxu0 %v518
    %545 = vmatmul.f32.gmra.mxu0 %v527
    %v546 = vpop.f32.mrf.mxu0
    %v547 = vadd.f32 %v524, %v546
    %548 = vdwg.mxu0
    %549 = vst [vmem:[#allocation9] sm:$0xff] %v547
    // Predicated region
    $region26: #{tpu_custom_call.1} parent=1 // pred_check
      _
    $region27: #{tpu_custom_call.1} parent=1 // pred_check_branch
      %551 = sbr.rel (0) target = $region29
    $region28: #{tpu_custom_call.1} parent=1 // pred_region
      %553 = vsyncadd [#allocation8], 0
      %s555 = sshll.u32 [#allocation9], 4
      %s556 = int_to_ptr.vmem [resolvable:$true] %s555
      %s557 = sshll.u32 %s7, 4
      %s558 = int_to_ptr.hbm [resolvable:$true] %s557
      %560 = dma.vmem_to_hbm [thread:$0]  %s556, 128, %s558, [#allocation8]
    $region29: #{tpu_custom_call.1} parent=1 // pred_fallthru
      _
    // Predicated region
    $region30: #{tpu_custom_call.1} parent=1 // pred_check
      _
    $region31: #{tpu_custom_call.1} parent=1 // pred_check_branch
      %562 = sbr.rel (0) target = $region33
    $region32: #{tpu_custom_call.1} parent=1 // pred_region
      %564 = dma.done [#allocation8], 128
    $region33: #{tpu_custom_call.1} parent=1 // pred_fallthru
      _
    %565 = vsyncpa [#allocation7], 1
    %566 = vsyncpa [#allocation8], 1

</llo_original>
